<compile_context>
chip_gen: v5e
topology: v5e:2x2
jax: 0.10.0
libtpu: 0.0.40
codegen_flags: <defaults>
</compile_context>

<pallas_src>
import functools

import jax
import jax.numpy as jnp
from jax.experimental import pallas as pl
from jax.experimental.pallas import tpu as pltpu

_LANE = 128


def _swish_kernel(x_ref, o_ref, *, beta):
    x = x_ref[...].astype(jnp.float32)
    o_ref[...] = (x * jax.nn.sigmoid(jnp.float32(beta) * x)).astype(o_ref.dtype)


def _swish_slab(x2d, beta, *, block_bytes, vmem_limit_bytes, alias_input):
    """Run the kernel over a lane-dense (rows, 128) slab."""
    rows, lane = x2d.shape
    dtype = x2d.dtype
    itemsize = jnp.dtype(dtype).itemsize
    # Sublane packing multiple for the row dim: 8 (32-bit), 16 (bf16), 32 (8-bit).
    sublane = max(8, 32 // itemsize)

    # Rows per ~block_bytes input block (sublane-aligned).
    target_rows = max(sublane, (block_bytes // (lane * itemsize)) // sublane * sublane)

    if rows <= 2 * sublane:
        # Tiny slab: a single full block (block == full array dims is legal).
        tile_rows, grid_n = rows, 1
    else:
        # Always >= 2 blocks so the pipeline overlaps and (on v7x) both
        # TensorCores get work; keep the block count even for balance.
        nblk = max(2, pl.cdiv(rows, target_rows))
        if nblk % 2:
            nblk += 1
        tile_rows = pl.cdiv(rows, nblk)
        tile_rows = ((tile_rows + sublane - 1) // sublane) * sublane
        grid_n = pl.cdiv(rows, tile_rows)   # ragged last row-block is masked

    kernel = functools.partial(_swish_kernel, beta=beta)

    n_elems = rows * lane
    cost = pl.CostEstimate(
        flops=4 * n_elems,
        transcendentals=n_elems,
        bytes_accessed=2 * n_elems * itemsize,
    )

    return pl.pallas_call(
        kernel,
        out_shape=jax.ShapeDtypeStruct((rows, lane), dtype),
        grid_spec=pl.GridSpec(
            grid=(grid_n,),
            in_specs=[pl.BlockSpec((tile_rows, lane), lambda i: (i, 0))],
            out_specs=pl.BlockSpec((tile_rows, lane), lambda i: (i, 0)),
        ),
        compiler_params=pltpu.CompilerParams(
            dimension_semantics=("parallel",),
            vmem_limit_bytes=vmem_limit_bytes,
        ),
        cost_estimate=cost,
        input_output_aliases=({0: 0} if alias_input else {}),
    )(x2d)


def swish(x, beta=1.0, *, block_bytes=8 * 1024 * 1024,
          vmem_limit_bytes=48 * 1024 * 1024, alias_input=False):
    """Elementwise swish on an arbitrarily-shaped array via a Pallas TPU kernel.

    alias_input=True adds input_output_aliases={0: 0}; only enable when the
    caller donates x (jit donate_argnums), otherwise XLA inserts a copy.
    """
    orig_shape = x.shape
    orig_dtype = x.dtype
    n = x.size
    if n == 0:
        return x

    beta = float(beta)  # static hyperparameter (as in the nn.Module __init__)

    x_flat = jnp.ravel(x)
    n_main = (n // _LANE) * _LANE   # 128-aligned prefix handled by the kernel
    tail = n - n_main               # < 128 leftover elements (jnp epilogue)

    pieces = []
    if n_main:
        x_main = x_flat if tail == 0 else x_flat[:n_main]
        x2d = x_main.reshape(n_main // _LANE, _LANE)
        out2d = _swish_slab(x2d, beta, block_bytes=block_bytes,
                            vmem_limit_bytes=vmem_limit_bytes,
                            alias_input=alias_input)
        pieces.append(out2d.reshape(-1))
    if tail:
        xt = x_flat[n_main:].astype(jnp.float32)
        pieces.append((xt * jax.nn.sigmoid(beta * xt)).astype(orig_dtype))

    out_flat = pieces[0] if len(pieces) == 1 else jnp.concatenate(pieces)
    return out_flat.reshape(orig_shape)


if __name__ == "__main__":
    beta = 1.0

    # NCHW activation, flat size divisible by 128 -> single-block fast path.
    x = jax.random.normal(jax.random.PRNGKey(0), (2, 4, 16, 16), dtype=jnp.float32)
    y = jax.block_until_ready(swish(x, beta=beta))
    y_ref = x * jax.nn.sigmoid(beta * x)
    assert y.shape == x.shape and y.dtype == x.dtype
    assert jnp.allclose(y, y_ref, atol=1e-6, rtol=1e-6)

    # Larger (still small) tensor exercising the >=2-block pipelined grid.
    xb = jax.random.normal(jax.random.PRNGKey(2), (16, 4, 16, 16), dtype=jnp.float32)
    yb = jax.block_until_ready(swish(xb, beta=0.5))
    yb_ref = xb * jax.nn.sigmoid(0.5 * xb)
    assert yb.shape == xb.shape and yb.dtype == xb.dtype
    assert jnp.allclose(yb, yb_ref, atol=1e-6, rtol=1e-6)

    # Ragged shape (flat size not a multiple of 128): aligned prefix through
    # the kernel, <128-element tail handled by the jnp epilogue (no pad/slice
    # round-trips).
    x2 = jax.random.normal(jax.random.PRNGKey(1), (3, 5, 11), dtype=jnp.float32)
    y2 = jax.block_until_ready(swish(x2, beta=2.0))
    y2_ref = x2 * jax.nn.sigmoid(2.0 * x2)
    assert y2.shape == x2.shape and y2.dtype == x2.dtype
    assert jnp.allclose(y2, y2_ref, atol=1e-6, rtol=1e-6)

    print("KERNEL_OK")
</pallas_src>

<mosaic_0001>
module attributes {stable_mosaic.version = 11 : i64} {
  func.func @_swish_kernel(%arg0: i32, %arg1: memref<16x128xf32, #tpu.memory_space<vmem>>, %arg2: memref<16x128xf32, #tpu.memory_space<vmem>>) attributes {dimension_semantics = [#tpu.dimension_semantics<parallel>], iteration_bounds = array<i64: 1>, scalar_prefetch = 0 : i64, scratch_operands = 0 : i64, tpu.core_type = #tpu.core_type<tc>, window_params = [{transform_indices = @transform_0, window_bounds = array<i64: 16, 128>}, {transform_indices = @transform_1, window_bounds = array<i64: 16, 128>}]} {
    %c0 = arith.constant 0 : index
    %c0_0 = arith.constant 0 : index
    %0 = vector.load %arg1[%c0, %c0_0] : memref<16x128xf32, #tpu.memory_space<vmem>>, vector<16x128xf32>
    %cst = arith.constant 1.000000e+00 : f32
    %1 = vector.broadcast %cst : f32 to vector<16x128xf32>
    %2 = arith.mulf %1, %0 : vector<16x128xf32>
    %3 = arith.negf %2 : vector<16x128xf32>
    %4 = math.exp %3 : vector<16x128xf32>
    %cst_1 = arith.constant 1.000000e+00 : f32
    %5 = vector.broadcast %cst_1 : f32 to vector<16x128xf32>
    %6 = arith.addf %5, %4 : vector<16x128xf32>
    %7 = arith.divf %5, %6 : vector<16x128xf32>
    %8 = arith.mulf %0, %7 : vector<16x128xf32>
    %c0_2 = arith.constant 0 : index
    %c0_3 = arith.constant 0 : index
    %9 = vector.load %arg2[%c0_2, %c0_3] : memref<16x128xf32, #tpu.memory_space<vmem>>, vector<16x128xf32>
    tpu.vector_store %arg2[%c0_2, %c0_3], %8 {strides = array<i32>} : memref<16x128xf32, #tpu.memory_space<vmem>>, vector<16x128xf32>,
    return
  }
  func.func @transform_0(%arg0: i32) -> (i32, i32) {
    %c0_i32 = arith.constant 0 : i32
    %c0_i32_0 = arith.constant 0 : i32
    return %arg0, %c0_i32 : i32, i32
  }
  func.func @transform_1(%arg0: i32) -> (i32, i32) {
    %c0_i32 = arith.constant 0 : i32
    %c0_i32_0 = arith.constant 0 : i32
    return %arg0, %c0_i32 : i32, i32
  }
}

</mosaic_0001>

<llo_original>
// kernel: tpu_custom_call.1
$region0: #{tpu_custom_call.1}
  #allocation0 [shape = 'u32[]', space=smem, size = 0x4, offset = 0x4, fixed_abs, tag = 'smem constant byte address 0x4 - core index']
  #allocation1 [shape = 'u32[72,128]{1,0:T(1,128)}', space=vmem, size = 0x9000, scoped, tag = 'internal scratch']
  %s0 = inlined_call_operand.hbm [shape: f32[16,128], index: 0, kind: input, shape index: {}]
  %s1 = inlined_call_operand.hbm [shape: f32[16,128], index: 1, kind: output, shape index: {}]
  %s2 = sld [smem:[#allocation0]]
  $region18: #{tpu_custom_call.1} parent=0
    _
  %s4 = ssub.s32 1, %s2
  %s5 = scalar_select 0, %s4, %s2
  $region1: #{tpu_custom_call.1} parent=0
    #allocation2 [shape = 'u8[8192]{0}', space=vmem, size = 0x2000, scoped, tag = 'input window, operand 0, single buffered']
    #allocation3 [shape = 's32[1]{0}', space=sflag, size = 0x4, scoped, tag = 'scoped memory for tpu_custom_call.1']
    #allocation4 [shape = 's32[1]{0}', space=sflag, size = 0x4, scoped, tag = 'scoped memory for tpu_custom_call.1']
    #allocation5 [shape = 'u8[8192]{0}', space=vmem, size = 0x2000, scoped, tag = 'output window, operand 0, single buffered']
    %6 = vsyncpa [#allocation3], 0
    %7 = vsyncpa [#allocation4], 0
    // Predicated region
    $region2: #{tpu_custom_call.1} parent=1 // pred_check
      _
    $region3: #{tpu_custom_call.1} parent=1 // pred_check_branch
      %9 = sbr.rel (0) target = $region5
    $region4: #{tpu_custom_call.1} parent=1 // pred_region
      %11 = vsyncadd [#allocation3], 0
      %s12 = sshll.u32 %s0, 4
      %s13 = int_to_ptr.hbm [resolvable:$true] %s12
      %s14 = sshll.u32 [#allocation2], 4
      %s15 = int_to_ptr.vmem [resolvable:$true] %s14
      %20 = dma.hbm_to_vmem [thread:$0]  %s13, 256, %s15, [#allocation3], 128, 128, 8
    $region5: #{tpu_custom_call.1} parent=1 // pred_fallthru
      _
    // Predicated region
    $region6: #{tpu_custom_call.1} parent=1 // pred_check
      _
    $region7: #{tpu_custom_call.1} parent=1 // pred_check_branch
      %22 = sbr.rel (0) target = $region9
    $region8: #{tpu_custom_call.1} parent=1 // pred_region
      %24 = dma.done [#allocation3], 256
    $region9: #{tpu_custom_call.1} parent=1 // pred_fallthru
      _
    %v25 = vld [vmem:[#allocation2] sm:$0xff]
    %v26 = vld [vmem:[#allocation2 + $0x8] sm:$0xff]
    %v27 = vxor.u32 %v25, 2147483648
    %v28 = vxor.u32 %v26, 2147483648
    %v29 = vmul.f32 %v27, 1.442695
    %v30 = vpow.pop %v29
    %v31 = vmul.f32 %v28, 1.442695
    %v32 = vpow.pop %v31
    %v33 = vadd.f32 %v30, 1.0
    %v34 = vadd.f32 %v32, 1.0
    %v35 = vrcp.pop %v33
    %v36 = vmul.f32 %v33, %v35
    %v37 = vsub.f32 1.0, %v36
    %v38 = vmul.f32 %v35, %v37
    %v39 = vadd.f32 %v35, %v38
    %vm40 = vweird.f32 %v33
    %vm41 = vweird.f32 %v35
    %vm42 = vmor %vm40, %vm41
    %v43 = vsel %vm42, %v35, %v39
    %v44 = vand.u32 2147483647, %v33
    %vm45 = vcmp.eq.f32.partialorder %v44, 8.507059e+37
    %v46 = vand.u32 %v33, 2147483648
    %v47 = vor.u32 1.1754944e-38, %v46
    %v48 = vsel %vm45, %v47, %v43
    %v49 = vmul.f32 1.0, %v48
    %v50 = vrcp.pop %v34
    %v51 = vmul.f32 %v34, %v50
    %v52 = vsub.f32 1.0, %v51
    %v53 = vmul.f32 %v50, %v52
    %v54 = vadd.f32 %v50, %v53
    %vm55 = vweird.f32 %v34
    %vm56 = vweird.f32 %v50
    %vm57 = vmor %vm55, %vm56
    %v58 = vsel %vm57, %v50, %v54
    %v59 = vand.u32 2147483647, %v34
    %vm60 = vcmp.eq.f32.partialorder %v59, 8.507059e+37
    %v61 = vand.u32 %v34, 2147483648
    %v62 = vor.u32 1.1754944e-38, %v61
    %v63 = vsel %vm60, %v62, %v58
    %v64 = vmul.f32 1.0, %v63
    %v65 = vmul.f32 %v25, %v49
    %v66 = vmul.f32 %v26, %v64
    %67 = vst [vmem:[#allocation5] sm:$0xff] %v65
    %68 = vst [vmem:[#allocation5 + $0x8] sm:$0xff] %v66
    // Predicated region
    $region10: #{tpu_custom_call.1} parent=1 // pred_check
      _
    $region11: #{tpu_custom_call.1} parent=1 // pred_check_branch
      %70 = sbr.rel (0) target = $region13
    $region12: #{tpu_custom_call.1} parent=1 // pred_region
      %72 = vsyncadd [#allocation4], 0
      %s73 = sshll.u32 [#allocation5], 4
      %s74 = int_to_ptr.vmem [resolvable:$true] %s73
      %s75 = sshll.u32 %s1, 4
      %s76 = int_to_ptr.hbm [resolvable:$true] %s75
      %81 = dma.vmem_to_hbm [thread:$0]  %s74, 256, %s76, [#allocation4], 128, 128, 8
    $region13: #{tpu_custom_call.1} parent=1 // pred_fallthru
      _
    // Predicated region
    $region14: #{tpu_custom_call.1} parent=1 // pred_check
      _
    $region15: #{tpu_custom_call.1} parent=1 // pred_check_branch
      %83 = sbr.rel (0) target = $region17
    $region16: #{tpu_custom_call.1} parent=1 // pred_region
      %85 = dma.done [#allocation4], 256
    $region17: #{tpu_custom_call.1} parent=1 // pred_fallthru
      _
    %86 = vsyncpa [#allocation3], 1
    %87 = vsyncpa [#allocation4], 1

</llo_original>
